<compile_context>
chip_gen: v5e
topology: v5e:2x2
jax: 0.10.0
libtpu: 0.0.40
codegen_flags: <defaults>
</compile_context>

<pallas_src>
import math
import functools

import jax
import jax.numpy as jnp
from jax.experimental import pallas as pl
from jax.experimental.pallas import tpu as pltpu


def _round_up(x, m):
    return ((x + m - 1) // m) * m


def _divisors(total, granule, cap):
    """Divisors of `total` that are multiples of `granule` and <= cap, descending."""
    out = []
    d = granule
    lim = min(total, cap)
    while d <= lim:
        if total % d == 0:
            out.append(d)
        d += granule
    out.reverse()
    return out


def _row_tile_candidates(n, cap):
    """Row-tile candidates (descending preference) and the padded row extent.

    Prefers tiles that divide N exactly (no wrapper-side pad/copy of adj) and
    are >=128 rows; a full-extent (== N) block is legal even when N % 8 != 0.
    """
    if n % 8 == 0:
        divs = _divisors(n, 8, cap)
        big = [t for t in divs if t >= 128]
        small = [t for t in divs if t < 128]
        if big:
            return big + small, n
        if n <= cap:
            return [n] + small, n
        return small, n                      # e.g. N = 8*prime: thin tiles, still no copy
    if n <= cap:
        return [n], n                        # single full-extent row block, no pad
    n_p = _round_up(n, 128)                  # unavoidable (<=127 row) pad + copy
    return _divisors(n_p, 128, cap), n_p


def _vmem_budget():
    """(physical VMEM bytes, planning budget) — generation aware."""
    phys = 64 << 20                          # conservative default: v7x per-TensorCore
    try:
        info = pltpu.get_tpu_info()
        phys = int(getattr(info, "vmem_capacity_bytes", phys)) or phys
    except Exception:
        pass
    budget = max(32 << 20, (phys * 3) // 4)  # leave >=16 MiB for Mosaic scratch
    return phys, budget


def _plan(n, f_in_p, f_out_p, adj_item, x_item, w_item, out_item, budget):
    """Pick (tile_n, tile_k, n_rows_p, n_k_p, x_resident, vmem_estimate)."""
    cap = 1024 if budget >= (80 << 20) else 512

    row_cands, n_rows_p = _row_tile_candidates(n, cap)

    def est(tn, tk, nkp, x_res):
        w_b = 2 * f_in_p * f_out_p * w_item      # invariant block, counted double-buffered
        b_b = 2 * 8 * f_out_p * 4
        x_b = 2 * (nkp if x_res else tk) * f_in_p * x_item
        adj_b = 2 * tn * tk * adj_item
        out_b = 2 * tn * f_out_p * out_item
        rep_b = 2 * tn * f_in_p * out_item
        acc_b = tn * f_in_p * 4
        return w_b + b_b + x_b + adj_b + out_b + rep_b + acc_b

    # Contraction-axis options, preferring ones that need no wrapper pad/copy.
    if n % 128 == 0:
        nopad_k = (_divisors(n, 128, cap), n)
    else:
        nopad_k = ([n], n)                   # single full-extent K block (legal, no pad)
    padded_nkp = _round_up(n, 128)
    padded_k = (_divisors(padded_nkp, 128, cap), padded_nkp)

    x_fits = 2 * padded_nkp * f_in_p * x_item <= min(budget // 4, 16 << 20)

    configs = [(nopad_k, x_res) for x_res in ((True, False) if x_fits else (False,))]
    if n % 128 != 0:
        configs += [(padded_k, x_res) for x_res in ((True, False) if x_fits else (False,))]

    for (k_cands, nkp), x_res in configs:
        for tn in row_cands:                 # large row tiles first
            for tk in k_cands:               # shrink the K tile first under pressure
                e = est(tn, tk, nkp, x_res)
                if e <= budget:
                    return tn, tk, n_rows_p, nkp, x_res, e

    # Last resort (e.g. a weight matrix that alone dwarfs VMEM).
    # TODO(synk): tile the output-feature dimension as well for such cases.
    k_cands, nkp = padded_k if n % 128 != 0 else nopad_k
    tn, tk = row_cands[-1], k_cands[-1]
    return tn, tk, n_rows_p, nkp, False, est(tn, tk, nkp, False)


def _gcn_kernel(adj_ref, x_ref, w_ref, b_ref, out_ref, rep_ref, acc_ref, *,
                tile_k, single_k, x_resident, mxu_bf16):
    # adj_ref: (tile_n, tile_k); x_ref: (n_k_p, F_in_p) if resident else
    # (tile_k, F_in_p); w_ref: (F_in_p, F_out_p); b_ref: (1, F_out_p) f32;
    # acc_ref: (tile_n, F_in_p) f32 accumulator (output stays resident over K).
    k = pl.program_id(1)

    adj_t = adj_ref[...]
    if x_resident and not single_k:
        start = pl.multiple_of(k * tile_k, tile_k)
        x_t = x_ref[pl.ds(start, tile_k), :]
    else:
        x_t = x_ref[...]
    if mxu_bf16:
        # In-kernel cast: full-rate bf16 MXU with zero extra HBM traffic;
        # accumulation stays f32 via preferred_element_type.
        adj_t = adj_t.astype(jnp.bfloat16)
        x_t = x_t.astype(jnp.bfloat16)

    part = jnp.dot(adj_t, x_t, preferred_element_type=jnp.float32)

    @pl.when(k == 0)
    def _():                                 # first K step assigns (no zero-init store)
        acc_ref[...] = part

    @pl.when(k > 0)
    def _():
        acc_ref[...] += part

    @pl.when(k == pl.num_programs(1) - 1)
    def _():
        # Stream rep and the rep @ W matmul straight from the VMEM accumulator
        # (keeps epilogue vreg pressure low).
        rep_ref[...] = acc_ref[...].astype(rep_ref.dtype)
        out = jnp.dot(acc_ref[...].astype(w_ref.dtype), w_ref[...],
                      preferred_element_type=jnp.float32)
        out_ref[...] = (out + b_ref[...]).astype(out_ref.dtype)


@functools.partial(jax.jit, static_argnames=("mxu_bf16",))
def graph_convolution(adj, x, weight, bias=None, *, mxu_bf16=False):
    """GCN layer forward: returns (adj @ x @ W (+ b), adj @ x)."""
    n, n2 = adj.shape
    if n != n2:
        raise ValueError("adj must be square")
    _, f_in = x.shape
    _, f_out = weight.shape
    out_dtype = x.dtype

    # Lane-dense feature padding (multiples of 128) — x / W / bias are tiny.
    f_in_p = _round_up(f_in, 128)
    f_out_p = _round_up(f_out, 128)

    phys, budget = _vmem_budget()
    w_item = 2 if mxu_bf16 else jnp.dtype(weight.dtype).itemsize
    tile_n, tile_k, n_rows_p, n_k_p, x_resident, vmem_est = _plan(
        n, f_in_p, f_out_p,
        adj_item=jnp.dtype(adj.dtype).itemsize,
        x_item=jnp.dtype(x.dtype).itemsize,
        w_item=w_item,
        out_item=jnp.dtype(out_dtype).itemsize,
        budget=budget)

    # Wrapper-side padding: skipped entirely when shapes already conform, so
    # the dominant adj stream is never copied (zero padding is exact when it
    # is needed, and is at most 127 elements per axis).
    pr, pk = n_rows_p - n, n_k_p - n
    adj_in = adj if (pr == 0 and pk == 0) else jnp.pad(adj, ((0, pr), (0, pk)))
    pxf = f_in_p - f_in
    x_in = x if (pk == 0 and pxf == 0) else jnp.pad(x, ((0, pk), (0, pxf)))

    w_in = weight if (f_in_p == f_in and f_out_p == f_out) else jnp.pad(
        weight, ((0, f_in_p - f_in), (0, f_out_p - f_out)))
    if mxu_bf16:
        w_in = w_in.astype(jnp.bfloat16)

    if bias is None:
        b_in = jnp.zeros((1, f_out_p), jnp.float32)
    else:
        b_in = bias.astype(jnp.float32).reshape(1, f_out)
        if f_out_p != f_out:
            b_in = jnp.pad(b_in, ((0, 0), (0, f_out_p - f_out)))

    grid = (n_rows_p // tile_n, n_k_p // tile_k)
    single_k = grid[1] == 1

    if x_resident:
        # Constant index_map: x is DMA'd once and stays VMEM-resident; the
        # kernel slices the K stripe with pl.ds (no per-row-tile re-reads).
        x_spec = pl.BlockSpec((n_k_p, f_in_p), lambda i, k: (0, 0))
    else:
        x_spec = pl.BlockSpec((tile_k, f_in_p), lambda i, k: (k, 0))

    kernel = functools.partial(_gcn_kernel, tile_k=tile_k, single_k=single_k,
                               x_resident=x_resident, mxu_bf16=mxu_bf16)

    vmem_limit = int(min(vmem_est + (8 << 20), phys - (8 << 20)))
    vmem_limit = int(max(vmem_limit, 32 << 20, vmem_est))

    out_p, rep_p = pl.pallas_call(
        kernel,
        out_shape=(
            jax.ShapeDtypeStruct((n_rows_p, f_out_p), out_dtype),   # output
            jax.ShapeDtypeStruct((n_rows_p, f_in_p), out_dtype),    # rep
        ),
        grid_spec=pltpu.PrefetchScalarGridSpec(
            num_scalar_prefetch=0,
            grid=grid,
            in_specs=[
                pl.BlockSpec((tile_n, tile_k), lambda i, k: (i, k)),    # adj tile
                x_spec,                                                 # x
                pl.BlockSpec((f_in_p, f_out_p), lambda i, k: (0, 0)),   # weight
                pl.BlockSpec((1, f_out_p), lambda i, k: (0, 0)),        # bias (f32)
            ],
            out_specs=[
                pl.BlockSpec((tile_n, f_out_p), lambda i, k: (i, 0)),
                pl.BlockSpec((tile_n, f_in_p), lambda i, k: (i, 0)),
            ],
            scratch_shapes=[pltpu.VMEM((tile_n, f_in_p), jnp.float32)],
        ),
        compiler_params=pltpu.CompilerParams(
            # Row axis "parallel" (v7x megacore splits it), K axis "arbitrary".
            dimension_semantics=("parallel", "arbitrary"),
            vmem_limit_bytes=vmem_limit,
        ),
    )(adj_in, x_in, w_in, b_in)

    return out_p[:n, :f_out], rep_p[:n, :f_in]


def init_params(key, in_features, out_features):
    # Mirrors reset_parameters(): uniform(-stdv, stdv), stdv = 1/sqrt(out_features)
    stdv = 1.0 / math.sqrt(out_features)
    kw, kb = jax.random.split(key)
    weight = jax.random.uniform(kw, (in_features, out_features),
                                minval=-stdv, maxval=stdv, dtype=jnp.float32)
    bias = jax.random.uniform(kb, (out_features,),
                              minval=-stdv, maxval=stdv, dtype=jnp.float32)
    return weight, bias


def _make_adj(key, n):
    # Synthetic symmetrically-normalized adjacency (dense surrogate for spmm).
    a = (jax.random.uniform(key, (n, n)) < 0.05).astype(jnp.float32)
    a = jnp.clip(a + a.T + jnp.eye(n, dtype=jnp.float32), 0.0, 1.0)
    deg = jnp.sum(a, axis=1)
    d_inv_sqrt = 1.0 / jnp.sqrt(deg)
    return a * d_inv_sqrt[:, None] * d_inv_sqrt[None, :]


def _reference(adj, x, weight, bias):
    rep = jnp.dot(adj, x, precision=jax.lax.Precision.HIGHEST)
    out = jnp.dot(rep, weight, precision=jax.lax.Precision.HIGHEST) + bias
    return out, rep


if __name__ == "__main__":
    key = jax.random.PRNGKey(0)

    # (N, F_in, F_out): exercises no-pad divisor tiling (64), a full-extent K
    # block with N not a multiple of 128 (600), and multi-step K accumulation
    # with a VMEM-resident x (2048).  adj is never copied for any of these.
    cases = [(64, 32, 16), (600, 96, 40), (2048, 64, 48)]
    for idx, (n, f_in, f_out) in enumerate(cases):
        k_adj, k_x, k_p = jax.random.split(jax.random.fold_in(key, idx), 3)
        adj = _make_adj(k_adj, n)
        x = jax.random.normal(k_x, (n, f_in), dtype=jnp.float32)
        weight, bias = init_params(k_p, f_in, f_out)

        out, rep = graph_convolution(adj, x, weight, bias)
        jax.block_until_ready((out, rep))

        out_r, rep_r = _reference(adj, x, weight, bias)
        tol = 1e-5 if n <= 64 else 1e-4
        assert jnp.allclose(rep, rep_r, atol=tol, rtol=tol), f"rep mismatch (N={n})"
        assert jnp.allclose(out, out_r, atol=tol, rtol=tol), f"out mismatch (N={n})"

    # bf16-MXU fast path (approximate: operands rounded to bf16 in-kernel,
    # accumulation stays f32) — checked at loose tolerance.
    n, f_in, f_out = 64, 32, 16
    k_adj, k_x, k_p = jax.random.split(jax.random.fold_in(key, 0), 3)
    adj = _make_adj(k_adj, n)
    x = jax.random.normal(k_x, (n, f_in), dtype=jnp.float32)
    weight, bias = init_params(k_p, f_in, f_out)
    out_bf, rep_bf = graph_convolution(adj, x, weight, bias, mxu_bf16=True)
    jax.block_until_ready((out_bf, rep_bf))
    out_r, rep_r = _reference(adj, x, weight, bias)
    assert jnp.allclose(rep_bf, rep_r, atol=5e-2, rtol=5e-2), "bf16 rep mismatch"
    assert jnp.allclose(out_bf, out_r, atol=5e-2, rtol=5e-2), "bf16 out mismatch"

    print("KERNEL_OK")
</pallas_src>

<mosaic_0001>
module attributes {stable_mosaic.version = 11 : i64} {
  func.func @_gcn_kernel(%arg0: i32, %arg1: i32, %arg2: memref<64x64xf32, #tpu.memory_space<vmem>>, %arg3: memref<64x128xf32, #tpu.memory_space<vmem>>, %arg4: memref<128x128xf32, #tpu.memory_space<vmem>>, %arg5: memref<1x128xf32, #tpu.memory_space<vmem>>, %arg6: memref<64x128xf32, #tpu.memory_space<vmem>>, %arg7: memref<64x128xf32, #tpu.memory_space<vmem>>, %arg8: memref<64x128xf32, #tpu.memory_space<vmem>>) attributes {dimension_semantics = [#tpu.dimension_semantics<parallel>, #tpu.dimension_semantics<arbitrary>], iteration_bounds = array<i64: 1, 1>, scalar_prefetch = 0 : i64, scratch_operands = 1 : i64, tpu.core_type = #tpu.core_type<tc>, window_params = [{transform_indices = @transform_0, window_bounds = array<i64: 64, 64>}, {pipeline_mode = #tpu.pipeline_mode<synchronous>, transform_indices = @transform_1, window_bounds = array<i64: 64, 128>}, {pipeline_mode = #tpu.pipeline_mode<synchronous>, transform_indices = @transform_2, window_bounds = array<i64: 128, 128>}, {pipeline_mode = #tpu.pipeline_mode<synchronous>, transform_indices = @transform_3, window_bounds = array<i64: 1, 128>}, {transform_indices = @transform_4, window_bounds = array<i64: 64, 128>}, {transform_indices = @transform_5, window_bounds = array<i64: 64, 128>}]} {
    %c0 = arith.constant 0 : index
    %c0_0 = arith.constant 0 : index
    %0 = vector.load %arg2[%c0, %c0_0] : memref<64x64xf32, #tpu.memory_space<vmem>>, vector<64x64xf32>
    %c0_1 = arith.constant 0 : index
    %c0_2 = arith.constant 0 : index
    %1 = vector.load %arg3[%c0_1, %c0_2] : memref<64x128xf32, #tpu.memory_space<vmem>>, vector<64x128xf32>
    %cst = arith.constant dense<0.000000e+00> : vector<64x128xf32>
    %2 = tpu.matmul %0, %1, %cst {dimension_numbers = #tpu.dot_dimension_numbers<[1], [0], [0], [1], [0, 0, 1, 1], [], []>} : vector<64x64xf32>, vector<64x128xf32>, vector<64x128xf32> -> vector<64x128xf32>
    %c0_i32 = arith.constant 0 : i32
    %3 = arith.cmpi eq, %arg1, %c0_i32 : i32
    %4 = arith.extui %3 : i1 to i32
    %c0_i32_3 = arith.constant 0 : i32
    %5 = arith.cmpi ne, %4, %c0_i32_3 : i32
    scf.if %5 {
      %c0_8 = arith.constant 0 : index
      %c0_9 = arith.constant 0 : index
      %12 = vector.load %arg8[%c0_8, %c0_9] : memref<64x128xf32, #tpu.memory_space<vmem>>, vector<64x128xf32>
      tpu.vector_store %arg8[%c0_8, %c0_9], %2 {strides = array<i32>} : memref<64x128xf32, #tpu.memory_space<vmem>>, vector<64x128xf32>,
    } else {
    }
    %c0_i32_4 = arith.constant 0 : i32
    %6 = arith.cmpi sgt, %arg1, %c0_i32_4 : i32
    %7 = arith.extui %6 : i1 to i32
    %c0_i32_5 = arith.constant 0 : i32
    %8 = arith.cmpi ne, %7, %c0_i32_5 : i32
    scf.if %8 {
      %c0_8 = arith.constant 0 : index
      %c0_9 = arith.constant 0 : index
      %12 = vector.load %arg8[%c0_8, %c0_9] : memref<64x128xf32, #tpu.memory_space<vmem>>, vector<64x128xf32>
      %13 = arith.addf %12, %2 : vector<64x128xf32>
      %c0_10 = arith.constant 0 : index
      %c0_11 = arith.constant 0 : index
      %14 = vector.load %arg8[%c0_10, %c0_11] : memref<64x128xf32, #tpu.memory_space<vmem>>, vector<64x128xf32>
      tpu.vector_store %arg8[%c0_10, %c0_11], %13 {strides = array<i32>} : memref<64x128xf32, #tpu.memory_space<vmem>>, vector<64x128xf32>,
    } else {
    }
    %c0_i32_6 = arith.constant 0 : i32
    %9 = arith.cmpi eq, %arg1, %c0_i32_6 : i32
    %10 = arith.extui %9 : i1 to i32
    %c0_i32_7 = arith.constant 0 : i32
    %11 = arith.cmpi ne, %10, %c0_i32_7 : i32
    scf.if %11 {
      %c0_8 = arith.constant 0 : index
      %c0_9 = arith.constant 0 : index
      %12 = vector.load %arg8[%c0_8, %c0_9] : memref<64x128xf32, #tpu.memory_space<vmem>>, vector<64x128xf32>
      %c0_10 = arith.constant 0 : index
      %c0_11 = arith.constant 0 : index
      %13 = vector.load %arg7[%c0_10, %c0_11] : memref<64x128xf32, #tpu.memory_space<vmem>>, vector<64x128xf32>
      tpu.vector_store %arg7[%c0_10, %c0_11], %12 {strides = array<i32>} : memref<64x128xf32, #tpu.memory_space<vmem>>, vector<64x128xf32>,
      %c0_12 = arith.constant 0 : index
      %c0_13 = arith.constant 0 : index
      %14 = vector.load %arg8[%c0_12, %c0_13] : memref<64x128xf32, #tpu.memory_space<vmem>>, vector<64x128xf32>
      %c0_14 = arith.constant 0 : index
      %c0_15 = arith.constant 0 : index
      %15 = vector.load %arg4[%c0_14, %c0_15] : memref<128x128xf32, #tpu.memory_space<vmem>>, vector<128x128xf32>
      %cst_16 = arith.constant dense<0.000000e+00> : vector<64x128xf32>
      %16 = tpu.matmul %14, %15, %cst_16 {dimension_numbers = #tpu.dot_dimension_numbers<[1], [0], [0], [1], [0, 0, 1, 1], [], []>} : vector<64x128xf32>, vector<128x128xf32>, vector<64x128xf32> -> vector<64x128xf32>
      %c0_17 = arith.constant 0 : index
      %c0_18 = arith.constant 0 : index
      %17 = vector.load %arg5[%c0_17, %c0_18] : memref<1x128xf32, #tpu.memory_space<vmem>>, vector<1x128xf32>
      %18 = vector.broadcast %17 : vector<1x128xf32> to vector<64x128xf32>
      %19 = arith.addf %16, %18 : vector<64x128xf32>
      %c0_19 = arith.constant 0 : index
      %c0_20 = arith.constant 0 : index
      %20 = vector.load %arg6[%c0_19, %c0_20] : memref<64x128xf32, #tpu.memory_space<vmem>>, vector<64x128xf32>
      tpu.vector_store %arg6[%c0_19, %c0_20], %19 {strides = array<i32>} : memref<64x128xf32, #tpu.memory_space<vmem>>, vector<64x128xf32>,
    } else {
    }
    return
  }
  func.func @transform_0(%arg0: i32, %arg1: i32) -> (i32, i32) {
    %c0_i32 = arith.constant 0 : i32
    return %arg0, %arg1 : i32, i32
  }
  func.func @transform_1(%arg0: i32, %arg1: i32) -> (i32, i32) {
    %c0_i32 = arith.constant 0 : i32
    %c0_i32_0 = arith.constant 0 : i32
    %c0_i32_1 = arith.constant 0 : i32
    return %c0_i32, %c0_i32_0 : i32, i32
  }
  func.func @transform_2(%arg0: i32, %arg1: i32) -> (i32, i32) {
    %c0_i32 = arith.constant 0 : i32
    %c0_i32_0 = arith.constant 0 : i32
    %c0_i32_1 = arith.constant 0 : i32
    return %c0_i32, %c0_i32_0 : i32, i32
  }
  func.func @transform_3(%arg0: i32, %arg1: i32) -> (i32, i32) {
    %c0_i32 = arith.constant 0 : i32
    %c0_i32_0 = arith.constant 0 : i32
    %c0_i32_1 = arith.constant 0 : i32
    return %c0_i32, %c0_i32_0 : i32, i32
  }
  func.func @transform_4(%arg0: i32, %arg1: i32) -> (i32, i32) {
    %c0_i32 = arith.constant 0 : i32
    %c0_i32_0 = arith.constant 0 : i32
    return %arg0, %c0_i32 : i32, i32
  }
  func.func @transform_5(%arg0: i32, %arg1: i32) -> (i32, i32) {
    %c0_i32 = arith.constant 0 : i32
    %c0_i32_0 = arith.constant 0 : i32
    return %arg0, %c0_i32 : i32, i32
  }
}

</mosaic_0001>

<llo_original>
// kernel: graph_convolution.1
$region0: #{graph_convolution.1}
  #allocation0 [shape = 'u32[]', space=smem, size = 0x4, offset = 0x4, fixed_abs, tag = 'smem constant byte address 0x4 - core index']
  #allocation1 [shape = 'u32[72,128]{1,0:T(1,128)}', space=vmem, size = 0x9000, scoped, tag = 'internal scratch']
  #allocation2 [shape = 'f32[64,128]{1,0:T(8,128)}', space=vmem, size = 0x8000, scoped, tag = 'scratch operand']
  %s0 = inlined_call_operand.vmem [shape: f32[64,64], index: 0, kind: input, shape index: {}]
  %s1 = inlined_call_operand.vmem [shape: f32[64,128], index: 1, kind: input, shape index: {}]
  %s2 = inlined_call_operand.vmem [shape: f32[128,128], index: 2, kind: input, shape index: {}]
  %s3 = inlined_call_operand.vmem [shape: f32[1,128], index: 3, kind: input, shape index: {}]
  %s4 = inlined_call_operand.vmem [shape: f32[64,128], index: 4, kind: output, shape index: {0}]
  %s5 = inlined_call_operand.vmem [shape: f32[64,128], index: 5, kind: output, shape index: {1}]
  %6 = xla_tuple %s4, %s5
  %s7 = sld [smem:[#allocation0]]
  $region46: #{graph_convolution.1} parent=0
    _
  %s9 = ssub.s32 1, %s7
  %s10 = scalar_select 0, %s9, %s7
  // Predicated region
  $region2: #{graph_convolution.1} parent=0 // pred_check
    _
  $region3: #{graph_convolution.1} parent=0 // pred_check_branch
    %12 = sbr.rel (0) target = $region5
  $region4: #{graph_convolution.1} parent=0 // pred_region
    _
  $region5: #{graph_convolution.1} parent=0 // pred_fallthru
    _
  // Predicated region
  $region6: #{graph_convolution.1} parent=0 // pred_check
    _
  $region7: #{graph_convolution.1} parent=0 // pred_check_branch
    %14 = sbr.rel (0) target = $region9
  $region8: #{graph_convolution.1} parent=0 // pred_region
    _
  $region9: #{graph_convolution.1} parent=0 // pred_fallthru
    _
  // Predicated region
  $region10: #{graph_convolution.1} parent=0 // pred_check
    _
  $region11: #{graph_convolution.1} parent=0 // pred_check_branch
    %16 = sbr.rel (0) target = $region13
  $region12: #{graph_convolution.1} parent=0 // pred_region
    _
  $region13: #{graph_convolution.1} parent=0 // pred_fallthru
    _
  // Predicated region
  $region14: #{graph_convolution.1} parent=0 // pred_check
    _
  $region15: #{graph_convolution.1} parent=0 // pred_check_branch
    %18 = sbr.rel (0) target = $region17
  $region16: #{graph_convolution.1} parent=0 // pred_region
    _
  $region17: #{graph_convolution.1} parent=0 // pred_fallthru
    _
  %v19 = vld [vmem:[%s0] sm:$0xff]
  %v20 = vld [vmem:[%s0 + $0x8] sm:$0xff]
  %v21 = vld [vmem:[%s0 + $0x10] sm:$0xff]
  %v22 = vld [vmem:[%s0 + $0x18] sm:$0xff]
  %v23 = vld [vmem:[%s0 + $0x20] sm:$0xff]
  %v24 = vld [vmem:[%s0 + $0x28] sm:$0xff]
  %v25 = vld [vmem:[%s0 + $0x30] sm:$0xff]
  %v26 = vld [vmem:[%s0 + $0x38] sm:$0xff]
  %v27 = vld [vmem:[%s1] sm:$0xff]
  %v28 = vld [vmem:[%s1 + $0x8] sm:$0xff]
  %v29 = vld [vmem:[%s1 + $0x10] sm:$0xff]
  %v30 = vld [vmem:[%s1 + $0x18] sm:$0xff]
  %v31 = vld [vmem:[%s1 + $0x20] sm:$0xff]
  %v32 = vld [vmem:[%s1 + $0x28] sm:$0xff]
  %v33 = vld [vmem:[%s1 + $0x30] sm:$0xff]
  %v34 = vld [vmem:[%s1 + $0x38] sm:$0xff]
  %vm35 = vcmask 523264
  %v37 = vsel %vm35, %v19, 0
  %v40 = vsel %vm35, %v20, 0
  %v43 = vsel %vm35, %v21, 0
  %v46 = vsel %vm35, %v22, 0
  %v49 = vsel %vm35, %v23, 0
  %v52 = vsel %vm35, %v24, 0
  %v55 = vsel %vm35, %v25, 0
  %v58 = vsel %vm35, %v26, 0
  %60 = vmatpush.msra.mxu0 0.0
  %61 = vmatpush.msra.mxu0 0.0
  %62 = vmatpush.msra.mxu0 0.0
  %63 = vmatpush.msra.mxu0 0.0
  %64 = vmatpush.msra.mxu0 0.0
  %65 = vmatpush.msra.mxu0 0.0
  %66 = vmatpush.msra.mxu0 0.0
  %67 = vmatpush.msra.mxu0 0.0
  %68 = vmatpush.msra.mxu0 %v34
  %69 = vmatpush.msra.mxu0 %v33
  %70 = vmatpush.msra.mxu0 %v32
  %71 = vmatpush.msra.mxu0 %v31
  %72 = vmatpush.msra.mxu0 %v30
  %73 = vmatpush.msra.mxu0 %v29
  %74 = vmatpush.msra.mxu0 %v28
  %75 = vmatpush.msra.mxu0 %v27
  %76 = vmatmul.f32.gmra.mxu0 %v37
  %v77 = vpop.f32.mrf.mxu0
  %v78 = vadd.f32 0.0, %v77
  %79 = vmatmul.f32.gmra.mxu0 %v40
  %v80 = vpop.f32.mrf.mxu0
  %v81 = vadd.f32 0.0, %v80
  %82 = vmatmul.f32.gmra.mxu0 %v43
  %v83 = vpop.f32.mrf.mxu0
  %v84 = vadd.f32 0.0, %v83
  %85 = vmatmul.f32.gmra.mxu0 %v46
  %v86 = vpop.f32.mrf.mxu0
  %v87 = vadd.f32 0.0, %v86
  %88 = vmatmul.f32.gmra.mxu0 %v49
  %v89 = vpop.f32.mrf.mxu0
  %v90 = vadd.f32 0.0, %v89
  %91 = vmatmul.f32.gmra.mxu0 %v52
  %v92 = vpop.f32.mrf.mxu0
  %v93 = vadd.f32 0.0, %v92
  %94 = vmatmul.f32.gmra.mxu0 %v55
  %v95 = vpop.f32.mrf.mxu0
  %v96 = vadd.f32 0.0, %v95
  %97 = vmatmul.f32.gmra.mxu0 %v58
  %v98 = vpop.f32.mrf.mxu0
  %v99 = vadd.f32 0.0, %v98
  %100 = vdwg.mxu0
  %p101 = scmp.eq.s32.totalorder 0, 0
  // Predicated region
  $region18: #{graph_convolution.1} parent=0 // pred_check
    %p102 = pneg %p101
  $region19: #{graph_convolution.1} parent=0 // pred_check_branch
    %104 = sbr.rel (%p102) target = $region21
  $region20: #{graph_convolution.1} parent=0 // pred_region
    %105 = vst [vmem:[#allocation2] sm:$0xff] %v78
    %106 = vst [vmem:[#allocation2 + $0x8] sm:$0xff] %v81
    %107 = vst [vmem:[#allocation2 + $0x10] sm:$0xff] %v84
    %108 = vst [vmem:[#allocation2 + $0x18] sm:$0xff] %v87
    %109 = vst [vmem:[#allocation2 + $0x20] sm:$0xff] %v90
    %110 = vst [vmem:[#allocation2 + $0x28] sm:$0xff] %v93
    %111 = vst [vmem:[#allocation2 + $0x30] sm:$0xff] %v96
    %112 = vst [vmem:[#allocation2 + $0x38] sm:$0xff] %v99
  $region21: #{graph_convolution.1} parent=0 // pred_fallthru
    _
  %p113 = scmp.gt.s32.totalorder 0, 0
  // Predicated region
  $region22: #{graph_convolution.1} parent=0 // pred_check
    %p114 = pneg %p113
  $region23: #{graph_convolution.1} parent=0 // pred_check_branch
    %116 = sbr.rel (%p114) target = $region25
  $region24: #{graph_convolution.1} parent=0 // pred_region
    %v117 = vld [vmem:[#allocation2] sm:$0xff]
    %v118 = vld [vmem:[#allocation2 + $0x8] sm:$0xff]
    %v119 = vld [vmem:[#allocation2 + $0x10] sm:$0xff]
    %v120 = vld [vmem:[#allocation2 + $0x18] sm:$0xff]
    %v121 = vld [vmem:[#allocation2 + $0x20] sm:$0xff]
    %v122 = vld [vmem:[#allocation2 + $0x28] sm:$0xff]
    %v123 = vld [vmem:[#allocation2 + $0x30] sm:$0xff]
    %v124 = vld [vmem:[#allocation2 + $0x38] sm:$0xff]
    %v125 = vadd.f32 %v117, %v78
    %v126 = vadd.f32 %v118, %v81
    %v127 = vadd.f32 %v119, %v84
    %v128 = vadd.f32 %v120, %v87
    %v129 = vadd.f32 %v121, %v90
    %v130 = vadd.f32 %v122, %v93
    %v131 = vadd.f32 %v123, %v96
    %v132 = vadd.f32 %v124, %v99
    %133 = vst [vmem:[#allocation2] sm:$0xff] %v125
    %134 = vst [vmem:[#allocation2 + $0x8] sm:$0xff] %v126
    %135 = vst [vmem:[#allocation2 + $0x10] sm:$0xff] %v127
    %136 = vst [vmem:[#allocation2 + $0x18] sm:$0xff] %v128
    %137 = vst [vmem:[#allocation2 + $0x20] sm:$0xff] %v129
    %138 = vst [vmem:[#allocation2 + $0x28] sm:$0xff] %v130
    %139 = vst [vmem:[#allocation2 + $0x30] sm:$0xff] %v131
    %140 = vst [vmem:[#allocation2 + $0x38] sm:$0xff] %v132
  $region25: #{graph_convolution.1} parent=0 // pred_fallthru
    _
  // Predicated region
  $region26: #{graph_convolution.1} parent=0 // pred_check
    %p141 = pneg %p101
  $region27: #{graph_convolution.1} parent=0 // pred_check_branch
    %143 = sbr.rel (%p141) target = $region29
  $region28: #{graph_convolution.1} parent=0 // pred_region
    %v144 = vld [vmem:[#allocation2] sm:$0xff]
    %v145 = vld [vmem:[#allocation2 + $0x8] sm:$0xff]
    %v146 = vld [vmem:[#allocation2 + $0x10] sm:$0xff]
    %v147 = vld [vmem:[#allocation2 + $0x18] sm:$0xff]
    %v148 = vld [vmem:[#allocation2 + $0x20] sm:$0xff]
    %v149 = vld [vmem:[#allocation2 + $0x28] sm:$0xff]
    %v150 = vld [vmem:[#allocation2 + $0x30] sm:$0xff]
    %v151 = vld [vmem:[#allocation2 + $0x38] sm:$0xff]
    %152 = vst [vmem:[%s5] sm:$0xff] %v144
    %153 = vst [vmem:[%s5 + $0x8] sm:$0xff] %v145
    %154 = vst [vmem:[%s5 + $0x10] sm:$0xff] %v146
    %155 = vst [vmem:[%s5 + $0x18] sm:$0xff] %v147
    %156 = vst [vmem:[%s5 + $0x20] sm:$0xff] %v148
    %157 = vst [vmem:[%s5 + $0x28] sm:$0xff] %v149
    %158 = vst [vmem:[%s5 + $0x30] sm:$0xff] %v150
    %159 = vst [vmem:[%s5 + $0x38] sm:$0xff] %v151
    %v160 = vld [vmem:[#allocation2] sm:$0xff]
    %v161 = vld [vmem:[#allocation2 + $0x8] sm:$0xff]
    %v162 = vld [vmem:[#allocation2 + $0x10] sm:$0xff]
    %v163 = vld [vmem:[#allocation2 + $0x18] sm:$0xff]
    %v164 = vld [vmem:[#allocation2 + $0x20] sm:$0xff]
    %v165 = vld [vmem:[#allocation2 + $0x28] sm:$0xff]
    %v166 = vld [vmem:[#allocation2 + $0x30] sm:$0xff]
    %v167 = vld [vmem:[#allocation2 + $0x38] sm:$0xff]
    %v168 = vld [vmem:[%s2] sm:$0xff]
    %v169 = vld [vmem:[%s2 + $0x8] sm:$0xff]
    %v170 = vld [vmem:[%s2 + $0x10] sm:$0xff]
    %v171 = vld [vmem:[%s2 + $0x18] sm:$0xff]
    %v172 = vld [vmem:[%s2 + $0x20] sm:$0xff]
    %v173 = vld [vmem:[%s2 + $0x28] sm:$0xff]
    %v174 = vld [vmem:[%s2 + $0x30] sm:$0xff]
    %v175 = vld [vmem:[%s2 + $0x38] sm:$0xff]
    %v176 = vld [vmem:[%s2 + $0x40] sm:$0xff]
    %v177 = vld [vmem:[%s2 + $0x48] sm:$0xff]
    %v178 = vld [vmem:[%s2 + $0x50] sm:$0xff]
    %v179 = vld [vmem:[%s2 + $0x58] sm:$0xff]
    %v180 = vld [vmem:[%s2 + $0x60] sm:$0xff]
    %v181 = vld [vmem:[%s2 + $0x68] sm:$0xff]
    %v182 = vld [vmem:[%s2 + $0x70] sm:$0xff]
    %v183 = vld [vmem:[%s2 + $0x78] sm:$0xff]
    %v184 = vld [vmem:[%s3] sm:$0x1]
    %v186 = vperm.slane %v184, 0
    %188 = vmatpush.msra.mxu0 %v183
    %189 = vmatpush.msra.mxu0 %v182
    %190 = vmatpush.msra.mxu0 %v181
    %191 = vmatpush.msra.mxu0 %v180
    %192 = vmatpush.msra.mxu0 %v179
    %193 = vmatpush.msra.mxu0 %v178
    %194 = vmatpush.msra.mxu0 %v177
    %195 = vmatpush.msra.mxu0 %v176
    %196 = vmatpush.msra.mxu0 %v175
    %197 = vmatpush.msra.mxu0 %v174
    %198 = vmatpush.msra.mxu0 %v173
    %199 = vmatpush.msra.mxu0 %v172
    %200 = vmatpush.msra.mxu0 %v171
    %201 = vmatpush.msra.mxu0 %v170
    %202 = vmatpush.msra.mxu0 %v169
    %203 = vmatpush.msra.mxu0 %v168
    %204 = vmatmul.f32.gmra.mxu0 %v160
    %v205 = vpop.f32.mrf.mxu0
    %v206 = vadd.f32 %v186, %v205
    %207 = vmatmul.f32.gmra.mxu0 %v161
    %v208 = vpop.f32.mrf.mxu0
    %v209 = vadd.f32 %v186, %v208
    %210 = vmatmul.f32.gmra.mxu0 %v162
    %v211 = vpop.f32.mrf.mxu0
    %v212 = vadd.f32 %v186, %v211
    %213 = vmatmul.f32.gmra.mxu0 %v163
    %v214 = vpop.f32.mrf.mxu0
    %v215 = vadd.f32 %v186, %v214
    %216 = vmatmul.f32.gmra.mxu0 %v164
    %v217 = vpop.f32.mrf.mxu0
    %v218 = vadd.f32 %v186, %v217
    %219 = vmatmul.f32.gmra.mxu0 %v165
    %v220 = vpop.f32.mrf.mxu0
    %v221 = vadd.f32 %v186, %v220
    %222 = vmatmul.f32.gmra.mxu0 %v166
    %v223 = vpop.f32.mrf.mxu0
    %v224 = vadd.f32 %v186, %v223
    %225 = vmatmul.f32.gmra.mxu0 %v167
    %v226 = vpop.f32.mrf.mxu0
    %v227 = vadd.f32 %v186, %v226
    %228 = vdwg.mxu0
    %229 = vst [vmem:[%s4] sm:$0xff] %v206
    %230 = vst [vmem:[%s4 + $0x8] sm:$0xff] %v209
    %231 = vst [vmem:[%s4 + $0x10] sm:$0xff] %v212
    %232 = vst [vmem:[%s4 + $0x18] sm:$0xff] %v215
    %233 = vst [vmem:[%s4 + $0x20] sm:$0xff] %v218
    %234 = vst [vmem:[%s4 + $0x28] sm:$0xff] %v221
    %235 = vst [vmem:[%s4 + $0x30] sm:$0xff] %v224
    %236 = vst [vmem:[%s4 + $0x38] sm:$0xff] %v227
  $region29: #{graph_convolution.1} parent=0 // pred_fallthru
    _
  // Predicated region
  $region30: #{graph_convolution.1} parent=0 // pred_check
    _
  $region31: #{graph_convolution.1} parent=0 // pred_check_branch
    %238 = sbr.rel (0) target = $region33
  $region32: #{graph_convolution.1} parent=0 // pred_region
    _
  $region33: #{graph_convolution.1} parent=0 // pred_fallthru
    _
  // Predicated region
  $region34: #{graph_convolution.1} parent=0 // pred_check
    _
  $region35: #{graph_convolution.1} parent=0 // pred_check_branch
    %240 = sbr.rel (0) target = $region37
  $region36: #{graph_convolution.1} parent=0 // pred_region
    _
  $region37: #{graph_convolution.1} parent=0 // pred_fallthru
    _
  // Predicated region
  $region38: #{graph_convolution.1} parent=0 // pred_check
    _
  $region39: #{graph_convolution.1} parent=0 // pred_check_branch
    %242 = sbr.rel (0) target = $region41
  $region40: #{graph_convolution.1} parent=0 // pred_region
    _
  $region41: #{graph_convolution.1} parent=0 // pred_fallthru
    _
  // Predicated region
  $region42: #{graph_convolution.1} parent=0 // pred_check
    _
  $region43: #{graph_convolution.1} parent=0 // pred_check_branch
    %244 = sbr.rel (0) target = $region45
  $region44: #{graph_convolution.1} parent=0 // pred_region
    _
  $region45: #{graph_convolution.1} parent=0 // pred_fallthru
    _

</llo_original>
